<compile_context>
chip_gen: v5e
topology: v5e:2x2
jax: 0.10.0
libtpu: 0.0.40
codegen_flags: <defaults>
</compile_context>

<pallas_src>
import jax
import jax.numpy as jnp
from jax.experimental import pallas as pl
from jax.experimental.pallas import tpu as pltpu


def _round_up(v, m):
    return ((v + m - 1) // m) * m


def sugrl_mlp_kernel(x_ref, w_ref, b_ref, o_ref):
    # ReLU in the input dtype (VPU), then MXU matmul with f32 accumulation.
    x = jnp.maximum(x_ref[...], 0.0)
    y = jnp.dot(x, w_ref[...], preferred_element_type=jnp.float32)
    y = y + b_ref[...].astype(jnp.float32)
    o_ref[...] = y.astype(o_ref.dtype)


def sugrl_mlp(x, w_t, b, *, block_m=1024, block_n=512):
    """Eval-mode SugrlMLP forward: relu(x) @ w_t + b.

    x:   (N, F_in)
    w_t: (F_in, F_out)   (transposed torch weight)
    b:   (F_out,)
    """
    N, F_in = x.shape
    F_out = w_t.shape[1]
    xi = x.dtype.itemsize
    wi = w_t.dtype.itemsize
    oi = xi

    # ---- Lane-dense outputs: pad F_out (weights/bias only, one-time) to a
    # multiple of 128. Padded columns are zero and sliced off afterwards.
    Fo_pad = max(_round_up(F_out, 128), 128)
    if Fo_pad != F_out:
        w_t = jnp.pad(w_t, ((0, 0), (0, Fo_pad - F_out)))
        b = jnp.pad(b, ((0, Fo_pad - F_out),))
    b2 = b.reshape(1, Fo_pad)
    bi = b2.dtype.itemsize

    # ---- Per-generation VMEM budget (v5e/v6e: 128 MiB, v7x: 64 MiB).
    try:
        vmem_cap = int(pltpu.get_tpu_info().vmem_capacity_bytes)
    except Exception:
        vmem_cap = 64 << 20  # conservative fallback (v7x)
    vmem_budget = int(vmem_cap * 0.75)

    # ---- Row tile: large and MXU-aligned; keep >=2 row steps for mid/large N
    # so the "parallel" row axis can shard across v7x's two TensorCores.
    if N <= block_m:
        bm = _round_up(max(N // 2, 1), 128) if N >= 512 else N
    else:
        bm = block_m

    # ---- Column tile: keep the (small) weight fully resident when possible.
    weight_bytes = F_in * Fo_pad * wi
    weight_resident = weight_bytes <= (8 << 20)
    bn = Fo_pad if weight_resident else min(block_n, Fo_pad)

    def footprint(bm_, bn_):
        return (2 * bm_ * F_in * xi      # double-buffered x tile
                + 2 * F_in * bn_ * wi    # weight slab (conservative x2)
                + 2 * bm_ * bn_ * oi     # output tile
                + 2 * bn_ * bi)          # bias slice

    # Shrink the row tile first (never the lane-dense output width) if the
    # double-buffered footprint exceeds the per-generation budget.
    while footprint(bm, bn) > vmem_budget and bm > 256:
        bm = max(256, _round_up(bm // 2, 128))
    while footprint(bm, bn) > vmem_budget and bn > 256:
        bn = max(256, _round_up(bn // 2, 128))

    n_row = pl.cdiv(N, bm)
    n_col = pl.cdiv(Fo_pad, bn)

    vmem_need = footprint(bm, bn)
    vmem_limit = int(min(max(int(vmem_need * 1.25), 32 << 20), vmem_cap))

    cost = pl.CostEstimate(
        flops=2 * N * F_in * Fo_pad,
        transcendentals=0,
        bytes_accessed=(N * F_in * xi + F_in * Fo_pad * wi
                        + Fo_pad * bi + N * Fo_pad * oi),
    )
    out_shape = jax.ShapeDtypeStruct((N, Fo_pad), x.dtype)

    if n_col == 1:
        # 1-D grid over row tiles; weight/bias block index is constant so the
        # weight is DMA'd from HBM once and stays resident in VMEM.
        grid_spec = pltpu.PrefetchScalarGridSpec(
            num_scalar_prefetch=0,
            grid=(n_row,),
            in_specs=[
                pl.BlockSpec((bm, F_in), lambda i: (i, 0)),   # row tile of x
                pl.BlockSpec((F_in, bn), lambda i: (0, 0)),   # resident weight
                pl.BlockSpec((1, bn), lambda i: (0, 0)),      # resident bias
            ],
            out_specs=pl.BlockSpec((bm, bn), lambda i: (i, 0)),
        )
        dims = ("parallel",)
    else:
        # 2-D fallback for genuinely large F_out: put the larger operand on
        # the inner (fast) axis so the smaller one is the one revisited.
        x_bytes = N * F_in * xi
        if weight_bytes >= x_bytes:
            # Weight bigger: each weight column slab stays resident, x streams.
            grid = (n_col, n_row)
            x_spec = pl.BlockSpec((bm, F_in), lambda j, i: (i, 0))
            w_spec = pl.BlockSpec((F_in, bn), lambda j, i: (0, j))
            b_spec = pl.BlockSpec((1, bn), lambda j, i: (0, j))
            o_spec = pl.BlockSpec((bm, bn), lambda j, i: (i, j))
        else:
            # x bigger: each x row tile stays resident, weight streams.
            grid = (n_row, n_col)
            x_spec = pl.BlockSpec((bm, F_in), lambda i, j: (i, 0))
            w_spec = pl.BlockSpec((F_in, bn), lambda i, j: (0, j))
            b_spec = pl.BlockSpec((1, bn), lambda i, j: (0, j))
            o_spec = pl.BlockSpec((bm, bn), lambda i, j: (i, j))
        grid_spec = pltpu.PrefetchScalarGridSpec(
            num_scalar_prefetch=0,
            grid=grid,
            in_specs=[x_spec, w_spec, b_spec],
            out_specs=o_spec,
        )
        dims = ("parallel", "parallel")

    out = pl.pallas_call(
        sugrl_mlp_kernel,
        out_shape=out_shape,
        grid_spec=grid_spec,
        compiler_params=pltpu.CompilerParams(
            dimension_semantics=dims,
            vmem_limit_bytes=vmem_limit,
        ),
        cost_estimate=cost,
    )(x, w_t, b2)

    if Fo_pad != F_out:
        out = out[:, :F_out]
    return out


if __name__ == "__main__":
    # Small shapes consistent with the module: batch=256 rows, in_channels=32,
    # cfg=[512, 128] -> output features = cfg[-1] = 128 (only cfg[-1] matters).
    N, F_IN = 256, 32
    F_OUT = 128

    key = jax.random.PRNGKey(0)
    kx, kw, kb = jax.random.split(key, 3)

    x = jax.random.normal(kx, (N, F_IN), dtype=jnp.float32)

    # Deterministic Linear init (PyTorch-style uniform bounds 1/sqrt(fan_in)).
    bound = 1.0 / (F_IN ** 0.5)
    w = jax.random.uniform(kw, (F_OUT, F_IN), minval=-bound, maxval=bound,
                           dtype=jnp.float32)           # torch weight (out, in)
    b = jax.random.uniform(kb, (F_OUT,), minval=-bound, maxval=bound,
                           dtype=jnp.float32)

    # f32 path (exact vs reference).
    out = jax.block_until_ready(sugrl_mlp(x, w.T, b))
    ref = jnp.maximum(x, 0.0) @ w.T + b
    assert out.shape == (N, F_OUT)
    assert jnp.allclose(out, ref, atol=1e-5, rtol=1e-5)

    # bf16 path (native MXU bf16, f32 accumulation; loose tolerance).
    out_bf16 = jax.block_until_ready(
        sugrl_mlp(x.astype(jnp.bfloat16), w.T.astype(jnp.bfloat16),
                  b.astype(jnp.bfloat16)))
    assert out_bf16.shape == (N, F_OUT)
    assert jnp.allclose(out_bf16.astype(jnp.float32), ref, atol=5e-2, rtol=5e-2)

    # Narrow-output path (cfg[-1]=64): exercises the lane-dense F_out padding
    # + post-slice while staying numerically exact.
    F_OUT2 = 64
    w2 = jax.random.uniform(kw, (F_OUT2, F_IN), minval=-bound, maxval=bound,
                            dtype=jnp.float32)
    b2 = jax.random.uniform(kb, (F_OUT2,), minval=-bound, maxval=bound,
                            dtype=jnp.float32)
    out2 = jax.block_until_ready(sugrl_mlp(x, w2.T, b2))
    ref2 = jnp.maximum(x, 0.0) @ w2.T + b2
    assert out2.shape == (N, F_OUT2)
    assert jnp.allclose(out2, ref2, atol=1e-5, rtol=1e-5)

    print("KERNEL_OK")
</pallas_src>

<mosaic_0001>
module attributes {stable_mosaic.version = 11 : i64} {
  func.func @sugrl_mlp_kernel(%arg0: i32, %arg1: memref<256x32xf32, #tpu.memory_space<vmem>>, %arg2: memref<32x128xf32, #tpu.memory_space<vmem>>, %arg3: memref<1x128xf32, #tpu.memory_space<vmem>>, %arg4: memref<256x128xf32, #tpu.memory_space<vmem>>) attributes {dimension_semantics = [#tpu.dimension_semantics<parallel>], iteration_bounds = array<i64: 1>, scalar_prefetch = 0 : i64, scratch_operands = 0 : i64, tpu.core_type = #tpu.core_type<tc>, window_params = [{transform_indices = @transform_0, window_bounds = array<i64: 256, 32>}, {pipeline_mode = #tpu.pipeline_mode<synchronous>, transform_indices = @transform_1, window_bounds = array<i64: 32, 128>}, {pipeline_mode = #tpu.pipeline_mode<synchronous>, transform_indices = @transform_2, window_bounds = array<i64: 1, 128>}, {transform_indices = @transform_3, window_bounds = array<i64: 256, 128>}]} {
    %c0 = arith.constant 0 : index
    %c0_0 = arith.constant 0 : index
    %0 = vector.load %arg1[%c0, %c0_0] : memref<256x32xf32, #tpu.memory_space<vmem>>, vector<256x32xf32>
    %cst = arith.constant 0.000000e+00 : f32
    %1 = vector.broadcast %cst : f32 to vector<256x32xf32>
    %2 = arith.maximumf %0, %1 : vector<256x32xf32>
    %c0_1 = arith.constant 0 : index
    %c0_2 = arith.constant 0 : index
    %3 = vector.load %arg2[%c0_1, %c0_2] : memref<32x128xf32, #tpu.memory_space<vmem>>, vector<32x128xf32>
    %cst_3 = arith.constant dense<0.000000e+00> : vector<256x128xf32>
    %4 = tpu.matmul %2, %3, %cst_3 {dimension_numbers = #tpu.dot_dimension_numbers<[1], [0], [0], [1], [0, 0, 1, 1], [], []>} : vector<256x32xf32>, vector<32x128xf32>, vector<256x128xf32> -> vector<256x128xf32>
    %c0_4 = arith.constant 0 : index
    %c0_5 = arith.constant 0 : index
    %5 = vector.load %arg3[%c0_4, %c0_5] : memref<1x128xf32, #tpu.memory_space<vmem>>, vector<1x128xf32>
    %6 = vector.broadcast %5 : vector<1x128xf32> to vector<256x128xf32>
    %7 = arith.addf %4, %6 : vector<256x128xf32>
    %c0_6 = arith.constant 0 : index
    %c0_7 = arith.constant 0 : index
    %8 = vector.load %arg4[%c0_6, %c0_7] : memref<256x128xf32, #tpu.memory_space<vmem>>, vector<256x128xf32>
    tpu.vector_store %arg4[%c0_6, %c0_7], %7 {strides = array<i32>} : memref<256x128xf32, #tpu.memory_space<vmem>>, vector<256x128xf32>,
    return
  }
  func.func @transform_0(%arg0: i32) -> (i32, i32) {
    %c0_i32 = arith.constant 0 : i32
    %c0_i32_0 = arith.constant 0 : i32
    return %arg0, %c0_i32 : i32, i32
  }
  func.func @transform_1(%arg0: i32) -> (i32, i32) {
    %c0_i32 = arith.constant 0 : i32
    %c0_i32_0 = arith.constant 0 : i32
    %c0_i32_1 = arith.constant 0 : i32
    return %c0_i32, %c0_i32_0 : i32, i32
  }
  func.func @transform_2(%arg0: i32) -> (i32, i32) {
    %c0_i32 = arith.constant 0 : i32
    %c0_i32_0 = arith.constant 0 : i32
    %c0_i32_1 = arith.constant 0 : i32
    return %c0_i32, %c0_i32_0 : i32, i32
  }
  func.func @transform_3(%arg0: i32) -> (i32, i32) {
    %c0_i32 = arith.constant 0 : i32
    %c0_i32_0 = arith.constant 0 : i32
    return %arg0, %c0_i32 : i32, i32
  }
}

</mosaic_0001>

<llo_original>
// kernel: tpu_custom_call.1
$region0: #{tpu_custom_call.1}
  #allocation0 [shape = 'u32[]', space=smem, size = 0x4, offset = 0x4, fixed_abs, tag = 'smem constant byte address 0x4 - core index']
  #allocation1 [shape = 'u32[72,128]{1,0:T(1,128)}', space=vmem, size = 0x9000, scoped, tag = 'internal scratch']
  %s0 = inlined_call_operand.vmem [shape: f32[256,32], index: 0, kind: input, shape index: {}]
  %s1 = inlined_call_operand.vmem [shape: f32[32,128], index: 1, kind: input, shape index: {}]
  %s2 = inlined_call_operand.vmem [shape: f32[1,128], index: 2, kind: input, shape index: {}]
  %s3 = inlined_call_operand.hbm [shape: f32[256,128], index: 3, kind: output, shape index: {}]
  %s4 = sld [smem:[#allocation0]]
  $region22: #{tpu_custom_call.1} parent=0
    _
  %s6 = ssub.s32 1, %s4
  %s7 = scalar_select 0, %s6, %s4
  $region1: #{tpu_custom_call.1} parent=0
    #allocation2 [shape = 'u8[131072]{0}', space=vmem, size = 0x20000, scoped, tag = 'output window, operand 0, single buffered']
    #allocation3 [shape = 's32[1]{0}', space=sflag, size = 0x4, scoped, tag = 'scoped memory for tpu_custom_call.1']
    %8 = vsyncpa [#allocation3], 0
    // Predicated region
    $region2: #{tpu_custom_call.1} parent=1 // pred_check
      _
    $region3: #{tpu_custom_call.1} parent=1 // pred_check_branch
      %10 = sbr.rel (0) target = $region5
    $region4: #{tpu_custom_call.1} parent=1 // pred_region
      _
    $region5: #{tpu_custom_call.1} parent=1 // pred_fallthru
      _
    // Predicated region
    $region6: #{tpu_custom_call.1} parent=1 // pred_check
      _
    $region7: #{tpu_custom_call.1} parent=1 // pred_check_branch
      %12 = sbr.rel (0) target = $region9
    $region8: #{tpu_custom_call.1} parent=1 // pred_region
      _
    $region9: #{tpu_custom_call.1} parent=1 // pred_fallthru
      _
    // Predicated region
    $region10: #{tpu_custom_call.1} parent=1 // pred_check
      _
    $region11: #{tpu_custom_call.1} parent=1 // pred_check_branch
      %14 = sbr.rel (0) target = $region13
    $region12: #{tpu_custom_call.1} parent=1 // pred_region
      _
    $region13: #{tpu_custom_call.1} parent=1 // pred_fallthru
      _
    %v15 = vld [vmem:[%s0] sm:$0xff]
    %v16 = vld [vmem:[%s0 + $0x8] sm:$0xff]
    %v17 = vld [vmem:[%s0 + $0x10] sm:$0xff]
    %v18 = vld [vmem:[%s0 + $0x18] sm:$0xff]
    %v19 = vld [vmem:[%s0 + $0x20] sm:$0xff]
    %v20 = vld [vmem:[%s0 + $0x28] sm:$0xff]
    %v21 = vld [vmem:[%s0 + $0x30] sm:$0xff]
    %v22 = vld [vmem:[%s0 + $0x38] sm:$0xff]
    %v23 = vld [vmem:[%s0 + $0x40] sm:$0xff]
    %v24 = vld [vmem:[%s0 + $0x48] sm:$0xff]
    %v25 = vld [vmem:[%s0 + $0x50] sm:$0xff]
    %v26 = vld [vmem:[%s0 + $0x58] sm:$0xff]
    %v27 = vld [vmem:[%s0 + $0x60] sm:$0xff]
    %v28 = vld [vmem:[%s0 + $0x68] sm:$0xff]
    %v29 = vld [vmem:[%s0 + $0x70] sm:$0xff]
    %v30 = vld [vmem:[%s0 + $0x78] sm:$0xff]
    %v31 = vld [vmem:[%s0 + $0x80] sm:$0xff]
    %v32 = vld [vmem:[%s0 + $0x88] sm:$0xff]
    %v33 = vld [vmem:[%s0 + $0x90] sm:$0xff]
    %v34 = vld [vmem:[%s0 + $0x98] sm:$0xff]
    %v35 = vld [vmem:[%s0 + $0xa0] sm:$0xff]
    %v36 = vld [vmem:[%s0 + $0xa8] sm:$0xff]
    %v37 = vld [vmem:[%s0 + $0xb0] sm:$0xff]
    %v38 = vld [vmem:[%s0 + $0xb8] sm:$0xff]
    %v39 = vld [vmem:[%s0 + $0xc0] sm:$0xff]
    %v40 = vld [vmem:[%s0 + $0xc8] sm:$0xff]
    %v41 = vld [vmem:[%s0 + $0xd0] sm:$0xff]
    %v42 = vld [vmem:[%s0 + $0xd8] sm:$0xff]
    %v43 = vld [vmem:[%s0 + $0xe0] sm:$0xff]
    %v44 = vld [vmem:[%s0 + $0xe8] sm:$0xff]
    %v45 = vld [vmem:[%s0 + $0xf0] sm:$0xff]
    %v46 = vld [vmem:[%s0 + $0xf8] sm:$0xff]
    %v47 = vmax.f32 %v15, 0.0
    %v48 = vmax.f32 %v16, 0.0
    %v49 = vmax.f32 %v17, 0.0
    %v50 = vmax.f32 %v18, 0.0
    %v51 = vmax.f32 %v19, 0.0
    %v52 = vmax.f32 %v20, 0.0
    %v53 = vmax.f32 %v21, 0.0
    %v54 = vmax.f32 %v22, 0.0
    %v55 = vmax.f32 %v23, 0.0
    %v56 = vmax.f32 %v24, 0.0
    %v57 = vmax.f32 %v25, 0.0
    %v58 = vmax.f32 %v26, 0.0
    %v59 = vmax.f32 %v27, 0.0
    %v60 = vmax.f32 %v28, 0.0
    %v61 = vmax.f32 %v29, 0.0
    %v62 = vmax.f32 %v30, 0.0
    %v63 = vmax.f32 %v31, 0.0
    %v64 = vmax.f32 %v32, 0.0
    %v65 = vmax.f32 %v33, 0.0
    %v66 = vmax.f32 %v34, 0.0
    %v67 = vmax.f32 %v35, 0.0
    %v68 = vmax.f32 %v36, 0.0
    %v69 = vmax.f32 %v37, 0.0
    %v70 = vmax.f32 %v38, 0.0
    %v71 = vmax.f32 %v39, 0.0
    %v72 = vmax.f32 %v40, 0.0
    %v73 = vmax.f32 %v41, 0.0
    %v74 = vmax.f32 %v42, 0.0
    %v75 = vmax.f32 %v43, 0.0
    %v76 = vmax.f32 %v44, 0.0
    %v77 = vmax.f32 %v45, 0.0
    %v78 = vmax.f32 %v46, 0.0
    %v79 = vld [vmem:[%s1] sm:$0xff]
    %v80 = vld [vmem:[%s1 + $0x8] sm:$0xff]
    %v81 = vld [vmem:[%s1 + $0x10] sm:$0xff]
    %v82 = vld [vmem:[%s1 + $0x18] sm:$0xff]
    %v83 = vld [vmem:[%s2] sm:$0x1]
    %v85 = vperm.slane %v83, 0
    %vm87 = vcmask 261120
    %v89 = vsel %vm87, %v47, 0
    %v92 = vsel %vm87, %v48, 0
    %v95 = vsel %vm87, %v49, 0
    %v98 = vsel %vm87, %v50, 0
    %v101 = vsel %vm87, %v51, 0
    %v104 = vsel %vm87, %v52, 0
    %v107 = vsel %vm87, %v53, 0
    %v110 = vsel %vm87, %v54, 0
    %v113 = vsel %vm87, %v55, 0
    %v116 = vsel %vm87, %v56, 0
    %v119 = vsel %vm87, %v57, 0
    %v122 = vsel %vm87, %v58, 0
    %v125 = vsel %vm87, %v59, 0
    %v128 = vsel %vm87, %v60, 0
    %v131 = vsel %vm87, %v61, 0
    %v134 = vsel %vm87, %v62, 0
    %v137 = vsel %vm87, %v63, 0
    %v140 = vsel %vm87, %v64, 0
    %v143 = vsel %vm87, %v65, 0
    %v146 = vsel %vm87, %v66, 0
    %v149 = vsel %vm87, %v67, 0
    %v152 = vsel %vm87, %v68, 0
    %v155 = vsel %vm87, %v69, 0
    %v158 = vsel %vm87, %v70, 0
    %v161 = vsel %vm87, %v71, 0
    %v164 = vsel %vm87, %v72, 0
    %v167 = vsel %vm87, %v73, 0
    %v170 = vsel %vm87, %v74, 0
    %v173 = vsel %vm87, %v75, 0
    %v176 = vsel %vm87, %v76, 0
    %v179 = vsel %vm87, %v77, 0
    %v182 = vsel %vm87, %v78, 0
    %184 = vmatpush.msra.mxu0 0.0
    %185 = vmatpush.msra.mxu0 0.0
    %186 = vmatpush.msra.mxu0 0.0
    %187 = vmatpush.msra.mxu0 0.0
    %188 = vmatpush.msra.mxu0 0.0
    %189 = vmatpush.msra.mxu0 0.0
    %190 = vmatpush.msra.mxu0 0.0
    %191 = vmatpush.msra.mxu0 0.0
    %192 = vmatpush.msra.mxu0 0.0
    %193 = vmatpush.msra.mxu0 0.0
    %194 = vmatpush.msra.mxu0 0.0
    %195 = vmatpush.msra.mxu0 0.0
    %196 = vmatpush.msra.mxu0 %v82
    %197 = vmatpush.msra.mxu0 %v81
    %198 = vmatpush.msra.mxu0 %v80
    %199 = vmatpush.msra.mxu0 %v79
    %200 = vmatmul.f32.gmra.mxu0 %v89
    %v201 = vpop.f32.mrf.mxu0
    %v202 = vadd.f32 %v85, %v201
    %203 = vmatmul.f32.gmra.mxu0 %v92
    %v204 = vpop.f32.mrf.mxu0
    %v205 = vadd.f32 %v85, %v204
    %206 = vmatmul.f32.gmra.mxu0 %v95
    %v207 = vpop.f32.mrf.mxu0
    %v208 = vadd.f32 %v85, %v207
    %209 = vmatmul.f32.gmra.mxu0 %v98
    %v210 = vpop.f32.mrf.mxu0
    %v211 = vadd.f32 %v85, %v210
    %212 = vmatmul.f32.gmra.mxu0 %v101
    %v213 = vpop.f32.mrf.mxu0
    %v214 = vadd.f32 %v85, %v213
    %215 = vmatmul.f32.gmra.mxu0 %v104
    %v216 = vpop.f32.mrf.mxu0
    %v217 = vadd.f32 %v85, %v216
    %218 = vmatmul.f32.gmra.mxu0 %v107
    %v219 = vpop.f32.mrf.mxu0
    %v220 = vadd.f32 %v85, %v219
    %221 = vmatmul.f32.gmra.mxu0 %v110
    %v222 = vpop.f32.mrf.mxu0
    %v223 = vadd.f32 %v85, %v222
    %224 = vmatmul.f32.gmra.mxu0 %v113
    %v225 = vpop.f32.mrf.mxu0
    %v226 = vadd.f32 %v85, %v225
    %227 = vmatmul.f32.gmra.mxu0 %v116
    %v228 = vpop.f32.mrf.mxu0
    %v229 = vadd.f32 %v85, %v228
    %230 = vmatmul.f32.gmra.mxu0 %v119
    %v231 = vpop.f32.mrf.mxu0
    %v232 = vadd.f32 %v85, %v231
    %233 = vmatmul.f32.gmra.mxu0 %v122
    %v234 = vpop.f32.mrf.mxu0
    %v235 = vadd.f32 %v85, %v234
    %236 = vmatmul.f32.gmra.mxu0 %v125
    %v237 = vpop.f32.mrf.mxu0
    %v238 = vadd.f32 %v85, %v237
    %239 = vmatmul.f32.gmra.mxu0 %v128
    %v240 = vpop.f32.mrf.mxu0
    %v241 = vadd.f32 %v85, %v240
    %242 = vmatmul.f32.gmra.mxu0 %v131
    %v243 = vpop.f32.mrf.mxu0
    %v244 = vadd.f32 %v85, %v243
    %245 = vmatmul.f32.gmra.mxu0 %v134
    %v246 = vpop.f32.mrf.mxu0
    %v247 = vadd.f32 %v85, %v246
    %248 = vmatmul.f32.gmra.mxu0 %v137
    %v249 = vpop.f32.mrf.mxu0
    %v250 = vadd.f32 %v85, %v249
    %251 = vmatmul.f32.gmra.mxu0 %v140
    %v252 = vpop.f32.mrf.mxu0
    %v253 = vadd.f32 %v85, %v252
    %254 = vmatmul.f32.gmra.mxu0 %v143
    %v255 = vpop.f32.mrf.mxu0
    %v256 = vadd.f32 %v85, %v255
    %257 = vmatmul.f32.gmra.mxu0 %v146
    %v258 = vpop.f32.mrf.mxu0
    %v259 = vadd.f32 %v85, %v258
    %260 = vmatmul.f32.gmra.mxu0 %v149
    %v261 = vpop.f32.mrf.mxu0
    %v262 = vadd.f32 %v85, %v261
    %263 = vmatmul.f32.gmra.mxu0 %v152
    %v264 = vpop.f32.mrf.mxu0
    %v265 = vadd.f32 %v85, %v264
    %266 = vmatmul.f32.gmra.mxu0 %v155
    %v267 = vpop.f32.mrf.mxu0
    %v268 = vadd.f32 %v85, %v267
    %269 = vmatmul.f32.gmra.mxu0 %v158
    %v270 = vpop.f32.mrf.mxu0
    %v271 = vadd.f32 %v85, %v270
    %272 = vmatmul.f32.gmra.mxu0 %v161
    %v273 = vpop.f32.mrf.mxu0
    %v274 = vadd.f32 %v85, %v273
    %275 = vmatmul.f32.gmra.mxu0 %v164
    %v276 = vpop.f32.mrf.mxu0
    %v277 = vadd.f32 %v85, %v276
    %278 = vmatmul.f32.gmra.mxu0 %v167
    %v279 = vpop.f32.mrf.mxu0
    %v280 = vadd.f32 %v85, %v279
    %281 = vmatmul.f32.gmra.mxu0 %v170
    %v282 = vpop.f32.mrf.mxu0
    %v283 = vadd.f32 %v85, %v282
    %284 = vmatmul.f32.gmra.mxu0 %v173
    %v285 = vpop.f32.mrf.mxu0
    %v286 = vadd.f32 %v85, %v285
    %287 = vmatmul.f32.gmra.mxu0 %v176
    %v288 = vpop.f32.mrf.mxu0
    %v289 = vadd.f32 %v85, %v288
    %290 = vmatmul.f32.gmra.mxu0 %v179
    %v291 = vpop.f32.mrf.mxu0
    %v292 = vadd.f32 %v85, %v291
    %293 = vmatmul.f32.gmra.mxu0 %v182
    %v294 = vpop.f32.mrf.mxu0
    %v295 = vadd.f32 %v85, %v294
    %296 = vdwg.mxu0
    %297 = vst [vmem:[#allocation2] sm:$0xff] %v202
    %298 = vst [vmem:[#allocation2 + $0x8] sm:$0xff] %v205
    %299 = vst [vmem:[#allocation2 + $0x10] sm:$0xff] %v208
    %300 = vst [vmem:[#allocation2 + $0x18] sm:$0xff] %v211
    %301 = vst [vmem:[#allocation2 + $0x20] sm:$0xff] %v214
    %302 = vst [vmem:[#allocation2 + $0x28] sm:$0xff] %v217
    %303 = vst [vmem:[#allocation2 + $0x30] sm:$0xff] %v220
    %304 = vst [vmem:[#allocation2 + $0x38] sm:$0xff] %v223
    %305 = vst [vmem:[#allocation2 + $0x40] sm:$0xff] %v226
    %306 = vst [vmem:[#allocation2 + $0x48] sm:$0xff] %v229
    %307 = vst [vmem:[#allocation2 + $0x50] sm:$0xff] %v232
    %308 = vst [vmem:[#allocation2 + $0x58] sm:$0xff] %v235
    %309 = vst [vmem:[#allocation2 + $0x60] sm:$0xff] %v238
    %310 = vst [vmem:[#allocation2 + $0x68] sm:$0xff] %v241
    %311 = vst [vmem:[#allocation2 + $0x70] sm:$0xff] %v244
    %312 = vst [vmem:[#allocation2 + $0x78] sm:$0xff] %v247
    %313 = vst [vmem:[#allocation2 + $0x80] sm:$0xff] %v250
    %314 = vst [vmem:[#allocation2 + $0x88] sm:$0xff] %v253
    %315 = vst [vmem:[#allocation2 + $0x90] sm:$0xff] %v256
    %316 = vst [vmem:[#allocation2 + $0x98] sm:$0xff] %v259
    %317 = vst [vmem:[#allocation2 + $0xa0] sm:$0xff] %v262
    %318 = vst [vmem:[#allocation2 + $0xa8] sm:$0xff] %v265
    %319 = vst [vmem:[#allocation2 + $0xb0] sm:$0xff] %v268
    %320 = vst [vmem:[#allocation2 + $0xb8] sm:$0xff] %v271
    %321 = vst [vmem:[#allocation2 + $0xc0] sm:$0xff] %v274
    %322 = vst [vmem:[#allocation2 + $0xc8] sm:$0xff] %v277
    %323 = vst [vmem:[#allocation2 + $0xd0] sm:$0xff] %v280
    %324 = vst [vmem:[#allocation2 + $0xd8] sm:$0xff] %v283
    %325 = vst [vmem:[#allocation2 + $0xe0] sm:$0xff] %v286
    %326 = vst [vmem:[#allocation2 + $0xe8] sm:$0xff] %v289
    %327 = vst [vmem:[#allocation2 + $0xf0] sm:$0xff] %v292
    %328 = vst [vmem:[#allocation2 + $0xf8] sm:$0xff] %v295
    // Predicated region
    $region14: #{tpu_custom_call.1} parent=1 // pred_check
      _
    $region15: #{tpu_custom_call.1} parent=1 // pred_check_branch
      %330 = sbr.rel (0) target = $region17
    $region16: #{tpu_custom_call.1} parent=1 // pred_region
      %332 = vsyncadd [#allocation3], 0
      %s333 = sshll.u32 [#allocation2], 4
      %s334 = int_to_ptr.vmem [resolvable:$true] %s333
      %s335 = sshll.u32 %s3, 4
      %s336 = int_to_ptr.hbm [resolvable:$true] %s335
      %341 = dma.vmem_to_hbm [thread:$0]  %s334, 4096, %s336, [#allocation3], 128, 128, 8
    $region17: #{tpu_custom_call.1} parent=1 // pred_fallthru
      _
    // Predicated region
    $region18: #{tpu_custom_call.1} parent=1 // pred_check
      _
    $region19: #{tpu_custom_call.1} parent=1 // pred_check_branch
      %343 = sbr.rel (0) target = $region21
    $region20: #{tpu_custom_call.1} parent=1 // pred_region
      %345 = dma.done [#allocation3], 4096
    $region21: #{tpu_custom_call.1} parent=1 // pred_fallthru
      _
    %346 = vsyncpa [#allocation3], 1

</llo_original>
